<compile_context>
chip_gen: v6e
topology: v6e:2x2x1
jax: 0.10.0
libtpu: 0.0.40
codegen_flags: <defaults>
</compile_context>

<pallas_src>
import functools

import jax
import jax.numpy as jnp
from jax.experimental import pallas as pl
from jax.experimental.pallas import tpu as pltpu


def _cdiv(a, b):
    return (a + b - 1) // b


def _round_up(x, m):
    return _cdiv(x, m) * m


def _sublane_align(dtype):
    # f32 -> 8, bf16 -> 16, int8/fp8 -> 32 (sub-32-bit dtypes pack along sublanes).
    return 8 * max(1, 4 // jnp.dtype(dtype).itemsize)


def _device_defaults():
    try:
        kind = jax.devices()[0].device_kind.lower()
    except Exception:
        kind = ""
    if ("v5" in kind) or ("v6" in kind):
        # 128 MiB physical VMEM: go big on tiles, raise the scoped limit.
        return dict(tm=512, tn=512, tk=512,
                    vmem_limit=96 * 1024 * 1024, multi_core=False)
    # v7x (and unknown chips): 64 MiB VMEM, 2 TensorCores -> conservative tiles,
    # keep >= 2 blocks on a parallel axis so both cores get work.
    return dict(tm=256, tn=512, tk=512,
                vmem_limit=48 * 1024 * 1024, multi_core=True)


def _pick_tile(dim_padded, target, min_blocks=1):
    """Largest multiple of 128 <= target that divides dim_padded (itself a
    multiple of 128), preferring >= min_blocks blocks.  Divisibility keeps the
    padded dimension at round_up(dim, 128): zero extra ragged padding."""
    target = max(128, min(target, dim_padded))
    best = 128
    t = 128
    while t <= target:
        if dim_padded % t == 0 and dim_padded // t >= min_blocks:
            best = t
        t += 128
    return best


def _fc_kernel(x_ref, w_ref, b_ref, o_ref, *scratch, neg_slope):
    # f32 accumulation: either a dedicated VMEM scratch (non-f32 outputs) or
    # directly in the resident output tile (f32 outputs; saves VMEM + a copy).
    acc_ref = scratch[0] if scratch else o_ref
    k = pl.program_id(2)

    @pl.when(k == 0)
    def _():
        acc_ref[...] = jnp.zeros_like(acc_ref)

    # MXU: native-dtype operands, f32 accumulation.
    acc_ref[...] += jnp.dot(x_ref[...], w_ref[...],
                            preferred_element_type=jnp.float32)

    @pl.when(k == pl.num_programs(2) - 1)
    def _():
        # Fused epilogue on the resident tile: bias (+b_lrmul already folded),
        # leaky_relu, downcast.  w_lrmul is folded into the prepared weight.
        out = acc_ref[...] + b_ref[...]
        out = jnp.where(out >= 0.0, out, neg_slope * out)
        o_ref[...] = out.astype(o_ref.dtype)


def prepare_fc_params(weight, bias, w_lrmul, b_lrmul):
    """One-time (per parameter set) layout plumbing, hoisted out of the hot
    path: fold the equalized-LR scales into the parameters, transpose the
    weight to (Cin, Cout) and zero-pad both dims to multiples of 128."""
    Cout, Cin = weight.shape
    Kp = _round_up(Cin, 128)
    Np = _round_up(Cout, 128)
    w_scaled = (weight.astype(jnp.float32) * float(w_lrmul)).astype(weight.dtype)
    wt_p = jnp.pad(w_scaled.T, ((0, Kp - Cin), (0, Np - Cout)))
    if bias is None:
        b_eff = jnp.zeros((Cout,), jnp.float32)
    else:
        b_eff = bias.astype(jnp.float32) * float(b_lrmul)
    b_p = jnp.pad(b_eff.reshape(1, Cout), ((0, 0), (0, Np - Cout)))
    return dict(wt_p=wt_p, b_p=b_p, in_channels=Cin, out_channels=Cout)


def fc_forward(x, params, *, neg_slope=0.2, tm=None, tn=None, tk=None):
    """x: (B, Cin); params from prepare_fc_params -> (B, Cout)."""
    B, Cin = x.shape
    assert Cin == params["in_channels"]
    Cout = params["out_channels"]
    wt_p, b_p = params["wt_p"], params["b_p"]
    Kp, Np = wt_p.shape

    d = _device_defaults()

    # --- tile selection -----------------------------------------------------
    align = _sublane_align(x.dtype)
    if tm is None:
        # Balanced M tiling: avoid near-2x zero padding on ragged batch sizes.
        tm = _round_up(_cdiv(B, _cdiv(B, d["tm"])), align)
    Mp = _round_up(B, tm)
    m_blocks = Mp // tm
    small_batch = m_blocks == 1  # weight-streaming regime

    if tk is None:
        # Small-batch FC is pure weight streaming: fewer, larger K steps.
        tk = _pick_tile(Kp, 1024 if small_batch else d["tk"])
    if tn is None:
        # Dual-TC chips: keep >= 2 blocks along the parallel N axis when the
        # M grid has collapsed to a single block.
        need2 = d["multi_core"] and small_batch and Np >= 256
        tn = _pick_tile(Np, d["tn"], min_blocks=2 if need2 else 1)

    n_blocks, k_blocks = Np // tn, Kp // tk

    # --- per-call activation padding only (weights were prepared once) ------
    x_p = jnp.pad(x, ((0, Mp - B), (0, Kp - Cin)))

    # Deeper buffering of the streamed weight hides DMA issue latency in the
    # small-batch regime (guarded against degenerate, tiny grids).
    w_spec_kwargs = {}
    if small_batch and n_blocks * k_blocks >= 3:
        w_spec_kwargs = dict(pipeline_mode=pl.Buffered(3))

    out_is_f32 = jnp.dtype(x.dtype) == jnp.dtype(jnp.float32)
    scratch_shapes = [] if out_is_f32 else [pltpu.VMEM((tm, tn), jnp.float32)]

    x_item = jnp.dtype(x.dtype).itemsize
    w_item = jnp.dtype(wt_p.dtype).itemsize
    cost = pl.CostEstimate(
        flops=2 * Mp * Np * Kp,
        transcendentals=0,
        bytes_accessed=Mp * Kp * x_item + Kp * Np * w_item + Mp * Np * x_item,
    )

    kernel = functools.partial(_fc_kernel, neg_slope=float(neg_slope))

    out_p = pl.pallas_call(
        kernel,
        out_shape=jax.ShapeDtypeStruct((Mp, Np), x.dtype),
        grid_spec=pltpu.PrefetchScalarGridSpec(
            num_scalar_prefetch=0,
            grid=(m_blocks, n_blocks, k_blocks),
            in_specs=[
                pl.BlockSpec((tm, tk), lambda i, j, k: (i, k)),                  # x tile
                pl.BlockSpec((tk, tn), lambda i, j, k: (k, j), **w_spec_kwargs),  # w^T tile
                pl.BlockSpec((1, tn), lambda i, j, k: (0, j)),                   # bias tile
            ],
            out_specs=pl.BlockSpec((tm, tn), lambda i, j, k: (i, j)),
            scratch_shapes=scratch_shapes,
        ),
        compiler_params=pltpu.CompilerParams(
            dimension_semantics=("parallel", "parallel", "arbitrary"),
            vmem_limit_bytes=d["vmem_limit"],
        ),
        cost_estimate=cost,
    )(x_p, wt_p, b_p)

    return out_p[:B, :Cout]


def fc_reference(x, weight, bias, *, w_lrmul, b_lrmul, neg_slope=0.2):
    out = x.astype(jnp.float32) @ (weight.astype(jnp.float32) * w_lrmul).T
    if bias is not None:
        out = out + bias.astype(jnp.float32) * b_lrmul
    out = jnp.where(out >= 0, out, neg_slope * out)
    return out.astype(x.dtype)


def make_fc_params(key, in_channels, out_channels, gain=2 ** 0.5,
                   use_wscale=False, lrmul=1.0, dtype=jnp.float32):
    """Parameter init mirroring FC.__init__ (random bias to exercise the path)."""
    he_std = gain * in_channels ** (-0.5)
    if use_wscale:
        init_std = 1.0 / lrmul
        w_lrmul = he_std * lrmul
    else:
        init_std = he_std / lrmul
        w_lrmul = lrmul
    k_w, k_b = jax.random.split(key)
    weight = (jax.random.normal(k_w, (out_channels, in_channels),
                                dtype=jnp.float32) * init_std).astype(dtype)
    # Torch inits bias to zeros; use a small random bias so the path is tested.
    bias = (jax.random.normal(k_b, (out_channels,), dtype=jnp.float32) * 0.1).astype(dtype)
    b_lrmul = lrmul
    return weight, bias, float(w_lrmul), float(b_lrmul)


if __name__ == "__main__":
    key = jax.random.PRNGKey(0)
    keys = jax.random.split(key, 12)

    def check(out, ref, atol, rtol):
        a = out.astype(jnp.float32)
        b = ref.astype(jnp.float32)
        assert jnp.allclose(a, b, atol=atol, rtol=rtol), float(jnp.max(jnp.abs(a - b)))

    # --- Test 1: tiny f32 shape (pads to a single tile), with bias ----------
    B, Cin, Cout = 8, 32, 64
    x = jax.random.normal(keys[0], (B, Cin), dtype=jnp.float32)
    w, b, wl, bl = make_fc_params(keys[1], Cin, Cout, use_wscale=False, lrmul=1.0)
    params = prepare_fc_params(w, b, wl, bl)
    out = jax.block_until_ready(fc_forward(x, params))
    assert out.shape == (B, Cout)
    check(out, fc_reference(x, w, b, w_lrmul=wl, b_lrmul=bl), 1e-4, 1e-4)

    # --- Test 1b: bias=None path --------------------------------------------
    params_nb = prepare_fc_params(w, None, wl, bl)
    out = jax.block_until_ready(fc_forward(x, params_nb))
    check(out, fc_reference(x, w, None, w_lrmul=wl, b_lrmul=bl), 1e-4, 1e-4)

    # --- Test 2: wscale/lrmul; prepared weights reused across two batches ---
    Cin, Cout = 512, 384
    w, b, wl, bl = make_fc_params(keys[2], Cin, Cout, use_wscale=True, lrmul=0.01)
    params = prepare_fc_params(w, b, wl, bl)
    for i, Bi in enumerate((2, 40)):
        x = jax.random.normal(keys[3 + i], (Bi, Cin), dtype=jnp.float32)
        out = jax.block_until_ready(fc_forward(x, params))
        assert out.shape == (Bi, Cout)
        check(out, fc_reference(x, w, b, w_lrmul=wl, b_lrmul=bl), 1e-4, 1e-4)

    # --- Test 3: small-batch weight-streaming shape, engages Buffered(3) ----
    B, Cin, Cout = 4, 2048, 1024
    x = jax.random.normal(keys[5], (B, Cin), dtype=jnp.float32)
    w, b, wl, bl = make_fc_params(keys[6], Cin, Cout, use_wscale=True, lrmul=1.0)
    params = prepare_fc_params(w, b, wl, bl)
    out = jax.block_until_ready(fc_forward(x, params))
    assert out.shape == (B, Cout)
    check(out, fc_reference(x, w, b, w_lrmul=wl, b_lrmul=bl), 1e-3, 1e-3)

    # --- Test 4: bf16 operands native to the MXU; dtype-aware tm (16) -------
    B, Cin, Cout = 10, 256, 320
    x = jax.random.normal(keys[7], (B, Cin), dtype=jnp.bfloat16)
    w, b, wl, bl = make_fc_params(keys[8], Cin, Cout, use_wscale=True, lrmul=1.0,
                                  dtype=jnp.bfloat16)
    params = prepare_fc_params(w, b, wl, bl)
    out = jax.block_until_ready(fc_forward(x, params))
    assert out.shape == (B, Cout)
    check(out, fc_reference(x, w, b, w_lrmul=wl, b_lrmul=bl), 5e-2, 5e-2)

    print("KERNEL_OK")
</pallas_src>

<mosaic_0001>
module attributes {stable_mosaic.version = 11 : i64} {
  func.func @_fc_kernel(%arg0: i32, %arg1: i32, %arg2: i32, %arg3: memref<8x128xf32, #tpu.memory_space<vmem>>, %arg4: memref<128x128xf32, #tpu.memory_space<vmem>>, %arg5: memref<1x128xf32, #tpu.memory_space<vmem>>, %arg6: memref<8x128xf32, #tpu.memory_space<vmem>>) attributes {dimension_semantics = [#tpu.dimension_semantics<parallel>, #tpu.dimension_semantics<parallel>, #tpu.dimension_semantics<arbitrary>], iteration_bounds = array<i64: 1, 1, 1>, scalar_prefetch = 0 : i64, scratch_operands = 0 : i64, tpu.core_type = #tpu.core_type<tc>, window_params = [{transform_indices = @transform_0, window_bounds = array<i64: 8, 128>}, {transform_indices = @transform_1, window_bounds = array<i64: 128, 128>}, {transform_indices = @transform_2, window_bounds = array<i64: 1, 128>}, {transform_indices = @transform_3, window_bounds = array<i64: 8, 128>}]} {
    %c0_i32 = arith.constant 0 : i32
    %0 = arith.cmpi eq, %arg2, %c0_i32 : i32
    %1 = arith.extui %0 : i1 to i32
    %c0_i32_0 = arith.constant 0 : i32
    %2 = arith.cmpi ne, %1, %c0_i32_0 : i32
    scf.if %2 {
      %cst_10 = arith.constant 0.000000e+00 : f32
      %12 = vector.broadcast %cst_10 : f32 to vector<8x128xf32>
      %c0_11 = arith.constant 0 : index
      %c0_12 = arith.constant 0 : index
      %13 = vector.load %arg6[%c0_11, %c0_12] : memref<8x128xf32, #tpu.memory_space<vmem>>, vector<8x128xf32>
      tpu.vector_store %arg6[%c0_11, %c0_12], %12 {strides = array<i32>} : memref<8x128xf32, #tpu.memory_space<vmem>>, vector<8x128xf32>,
    } else {
    }
    %c0 = arith.constant 0 : index
    %c0_1 = arith.constant 0 : index
    %3 = vector.load %arg6[%c0, %c0_1] : memref<8x128xf32, #tpu.memory_space<vmem>>, vector<8x128xf32>
    %c0_2 = arith.constant 0 : index
    %c0_3 = arith.constant 0 : index
    %4 = vector.load %arg3[%c0_2, %c0_3] : memref<8x128xf32, #tpu.memory_space<vmem>>, vector<8x128xf32>
    %c0_4 = arith.constant 0 : index
    %c0_5 = arith.constant 0 : index
    %5 = vector.load %arg4[%c0_4, %c0_5] : memref<128x128xf32, #tpu.memory_space<vmem>>, vector<128x128xf32>
    %cst = arith.constant dense<0.000000e+00> : vector<8x128xf32>
    %6 = tpu.matmul %4, %5, %cst {dimension_numbers = #tpu.dot_dimension_numbers<[1], [0], [0], [1], [0, 0, 1, 1], [], []>} : vector<8x128xf32>, vector<128x128xf32>, vector<8x128xf32> -> vector<8x128xf32>
    %7 = arith.addf %3, %6 : vector<8x128xf32>
    %c0_6 = arith.constant 0 : index
    %c0_7 = arith.constant 0 : index
    %8 = vector.load %arg6[%c0_6, %c0_7] : memref<8x128xf32, #tpu.memory_space<vmem>>, vector<8x128xf32>
    tpu.vector_store %arg6[%c0_6, %c0_7], %7 {strides = array<i32>} : memref<8x128xf32, #tpu.memory_space<vmem>>, vector<8x128xf32>,
    %c0_i32_8 = arith.constant 0 : i32
    %9 = arith.cmpi eq, %arg2, %c0_i32_8 : i32
    %10 = arith.extui %9 : i1 to i32
    %c0_i32_9 = arith.constant 0 : i32
    %11 = arith.cmpi ne, %10, %c0_i32_9 : i32
    scf.if %11 {
      %c0_10 = arith.constant 0 : index
      %c0_11 = arith.constant 0 : index
      %12 = vector.load %arg6[%c0_10, %c0_11] : memref<8x128xf32, #tpu.memory_space<vmem>>, vector<8x128xf32>
      %c0_12 = arith.constant 0 : index
      %c0_13 = arith.constant 0 : index
      %13 = vector.load %arg5[%c0_12, %c0_13] : memref<1x128xf32, #tpu.memory_space<vmem>>, vector<1x128xf32>
      %14 = vector.broadcast %13 : vector<1x128xf32> to vector<8x128xf32>
      %15 = arith.addf %12, %14 : vector<8x128xf32>
      %cst_14 = arith.constant 0.000000e+00 : f32
      %16 = vector.broadcast %cst_14 : f32 to vector<8x128xf32>
      %17 = arith.cmpf oge, %15, %16 : vector<8x128xf32>
      %cst_15 = arith.constant 2.000000e-01 : f32
      %18 = vector.broadcast %cst_15 : f32 to vector<8x128xf32>
      %19 = arith.mulf %18, %15 : vector<8x128xf32>
      %20 = arith.select %17, %15, %19 : vector<8x128xi1>, vector<8x128xf32>
      %c0_16 = arith.constant 0 : index
      %c0_17 = arith.constant 0 : index
      %21 = vector.load %arg6[%c0_16, %c0_17] : memref<8x128xf32, #tpu.memory_space<vmem>>, vector<8x128xf32>
      tpu.vector_store %arg6[%c0_16, %c0_17], %20 {strides = array<i32>} : memref<8x128xf32, #tpu.memory_space<vmem>>, vector<8x128xf32>,
    } else {
    }
    return
  }
  func.func @transform_0(%arg0: i32, %arg1: i32, %arg2: i32) -> (i32, i32) {
    %c0_i32 = arith.constant 0 : i32
    return %arg0, %arg2 : i32, i32
  }
  func.func @transform_1(%arg0: i32, %arg1: i32, %arg2: i32) -> (i32, i32) {
    %c0_i32 = arith.constant 0 : i32
    return %arg2, %arg1 : i32, i32
  }
  func.func @transform_2(%arg0: i32, %arg1: i32, %arg2: i32) -> (i32, i32) {
    %c0_i32 = arith.constant 0 : i32
    %c0_i32_0 = arith.constant 0 : i32
    return %c0_i32, %arg1 : i32, i32
  }
  func.func @transform_3(%arg0: i32, %arg1: i32, %arg2: i32) -> (i32, i32) {
    %c0_i32 = arith.constant 0 : i32
    return %arg0, %arg1 : i32, i32
  }
}

</mosaic_0001>

<llo_original>
// kernel: tpu_custom_call.1
$region0: #{tpu_custom_call.1}
  #allocation0 [shape = 'u32[]', space=smem, size = 0x4, offset = 0x4, fixed_abs, tag = 'smem constant byte address 0x4 - core index']
  #allocation1 [shape = 'u32[144,128]{1,0:T(1,128)}', space=vmem, size = 0x12000, scoped, tag = 'internal scratch']
  %s0 = inlined_call_operand.hbm [shape: f32[8,128], index: 0, kind: input, shape index: {}]
  %s1 = inlined_call_operand.hbm [shape: f32[128,128], index: 1, kind: input, shape index: {}]
  %s2 = inlined_call_operand.vmem [shape: f32[1,128], index: 2, kind: input, shape index: {}]
  %s3 = inlined_call_operand.hbm [shape: f32[8,128], index: 3, kind: output, shape index: {}]
  %s4 = sld [smem:[#allocation0]]
  $region38: #{tpu_custom_call.1} parent=0
    _
  %s6 = ssub.s32 1, %s4
  %s7 = scalar_select 0, %s6, %s4
  $region1: #{tpu_custom_call.1} parent=0
    #allocation2 [shape = 'u8[4096]{0}', space=vmem, size = 0x1000, scoped, tag = 'input window, operand 0, single buffered']
    #allocation3 [shape = 's32[1]{0}', space=sflag, size = 0x4, scoped, tag = 'scoped memory for tpu_custom_call.1']
    #allocation4 [shape = 's32[1]{0}', space=sflag, size = 0x4, scoped, tag = 'scoped memory for tpu_custom_call.1']
    #allocation5 [shape = 'u8[65536]{0}', space=vmem, size = 0x10000, scoped, tag = 'input window, operand 1, single buffered']
    #allocation6 [shape = 's32[1]{0}', space=sflag, size = 0x4, scoped, tag = 'scoped memory for tpu_custom_call.1']
    #allocation7 [shape = 'u8[4096]{0}', space=vmem, size = 0x1000, scoped, tag = 'output window, operand 0, single buffered']
    %8 = vsyncpa [#allocation3], 0
    %9 = vsyncpa [#allocation6], 0
    %10 = vsyncpa [#allocation4], 0
    // Predicated region
    $region2: #{tpu_custom_call.1} parent=1 // pred_check
      _
    $region3: #{tpu_custom_call.1} parent=1 // pred_check_branch
      %12 = sbr.rel (0) target = $region5
    $region4: #{tpu_custom_call.1} parent=1 // pred_region
      %s14 = ssub.s32 128, 128
      %15 = vsyncadd [#allocation3], %s14
      %s17 = sshll.u32 [#allocation2], 4
      %s18 = int_to_ptr.vmem [resolvable:$true] %s17
      %20 = dma.hbm_to_vmem [thread:$0]  %s0, 128, %s18, [#allocation3]
    $region5: #{tpu_custom_call.1} parent=1 // pred_fallthru
      _
    // Predicated region
    $region6: #{tpu_custom_call.1} parent=1 // pred_check
      _
    $region7: #{tpu_custom_call.1} parent=1 // pred_check_branch
      %22 = sbr.rel (0) target = $region9
    $region8: #{tpu_custom_call.1} parent=1 // pred_region
      %s24 = ssub.s32 2048, 2048
      %25 = vsyncadd [#allocation6], %s24
      %s26 = sshll.u32 [#allocation5], 4
      %s27 = int_to_ptr.vmem [resolvable:$true] %s26
      %32 = dma.hbm_to_vmem [thread:$0]  %s1, 2048, %s27, [#allocation6], 128, 128, 8
    $region9: #{tpu_custom_call.1} parent=1 // pred_fallthru
      _
    // Predicated region
    $region10: #{tpu_custom_call.1} parent=1 // pred_check
      _
    $region11: #{tpu_custom_call.1} parent=1 // pred_check_branch
      %34 = sbr.rel (0) target = $region13
    $region12: #{tpu_custom_call.1} parent=1 // pred_region
      _
    $region13: #{tpu_custom_call.1} parent=1 // pred_fallthru
      _
    // Predicated region
    $region14: #{tpu_custom_call.1} parent=1 // pred_check
      _
    $region15: #{tpu_custom_call.1} parent=1 // pred_check_branch
      %36 = sbr.rel (0) target = $region17
    $region16: #{tpu_custom_call.1} parent=1 // pred_region
      %37 = dma.done [#allocation3], 128
    $region17: #{tpu_custom_call.1} parent=1 // pred_fallthru
      _
    // Predicated region
    $region18: #{tpu_custom_call.1} parent=1 // pred_check
      _
    $region19: #{tpu_custom_call.1} parent=1 // pred_check_branch
      %39 = sbr.rel (0) target = $region21
    $region20: #{tpu_custom_call.1} parent=1 // pred_region
      %40 = dma.done [#allocation6], 2048
    $region21: #{tpu_custom_call.1} parent=1 // pred_fallthru
      _
    %p41 = scmp.eq.s32.totalorder 0, 0
    // Predicated region
    $region22: #{tpu_custom_call.1} parent=1 // pred_check
      %p42 = pneg %p41
    $region23: #{tpu_custom_call.1} parent=1 // pred_check_branch
      %44 = sbr.rel (%p42) target = $region25
    $region24: #{tpu_custom_call.1} parent=1 // pred_region
      %45 = vst [vmem:[#allocation7] sm:$0xff] 0.0
    $region25: #{tpu_custom_call.1} parent=1 // pred_fallthru
      _
    %v46 = vld [vmem:[#allocation7] sm:$0xff]
    %v47 = vld [vmem:[#allocation2] sm:$0xff]
    %v48 = vld [vmem:[#allocation5] sm:$0xff]
    %v49 = vld [vmem:[#allocation5 + $0x8] sm:$0xff]
    %v50 = vld [vmem:[#allocation5 + $0x10] sm:$0xff]
    %v51 = vld [vmem:[#allocation5 + $0x18] sm:$0xff]
    %v52 = vld [vmem:[#allocation5 + $0x20] sm:$0xff]
    %v53 = vld [vmem:[#allocation5 + $0x28] sm:$0xff]
    %v54 = vld [vmem:[#allocation5 + $0x30] sm:$0xff]
    %v55 = vld [vmem:[#allocation5 + $0x38] sm:$0xff]
    %v56 = vld [vmem:[#allocation5 + $0x40] sm:$0xff]
    %v57 = vld [vmem:[#allocation5 + $0x48] sm:$0xff]
    %v58 = vld [vmem:[#allocation5 + $0x50] sm:$0xff]
    %v59 = vld [vmem:[#allocation5 + $0x58] sm:$0xff]
    %v60 = vld [vmem:[#allocation5 + $0x60] sm:$0xff]
    %v61 = vld [vmem:[#allocation5 + $0x68] sm:$0xff]
    %v62 = vld [vmem:[#allocation5 + $0x70] sm:$0xff]
    %v63 = vld [vmem:[#allocation5 + $0x78] sm:$0xff]
    %64 = vmatprep.subr.mxu0 0.0
    %65 = vmatpush1.msra.mxu0 %v63
    %66 = vmatprep.subr.mxu0 0.0
    %67 = vmatpush1.msra.mxu0 %v62
    %68 = vmatprep.subr.mxu0 0.0
    %69 = vmatpush1.msra.mxu0 %v61
    %70 = vmatprep.subr.mxu0 0.0
    %71 = vmatpush1.msra.mxu0 %v60
    %72 = vmatprep.subr.mxu0 0.0
    %73 = vmatpush1.msra.mxu0 %v59
    %74 = vmatprep.subr.mxu0 0.0
    %75 = vmatpush1.msra.mxu0 %v58
    %76 = vmatprep.subr.mxu0 0.0
    %77 = vmatpush1.msra.mxu0 %v57
    %78 = vmatprep.subr.mxu0 0.0
    %79 = vmatpush1.msra.mxu0 %v56
    %80 = vmatprep.subr.mxu0 0.0
    %81 = vmatpush1.msra.mxu0 %v55
    %82 = vmatprep.subr.mxu0 0.0
    %83 = vmatpush1.msra.mxu0 %v54
    %84 = vmatprep.subr.mxu0 0.0
    %85 = vmatpush1.msra.mxu0 %v53
    %86 = vmatprep.subr.mxu0 0.0
    %87 = vmatpush1.msra.mxu0 %v52
    %88 = vmatprep.subr.mxu0 0.0
    %89 = vmatpush1.msra.mxu0 %v51
    %90 = vmatprep.subr.mxu0 0.0
    %91 = vmatpush1.msra.mxu0 %v50
    %92 = vmatprep.subr.mxu0 0.0
    %93 = vmatpush1.msra.mxu0 %v49
    %94 = vmatprep.subr.mxu0 0.0
    %95 = vmatpush1.msra.mxu0 %v48
    %96 = vmatprep.subr.mxu0 0.0
    %97 = vmatpush2.msra.mxu0 0.0
    %98 = vmatprep.subr.mxu0 0.0
    %99 = vmatpush2.msra.mxu0 0.0
    %100 = vmatprep.subr.mxu0 0.0
    %101 = vmatpush2.msra.mxu0 0.0
    %102 = vmatprep.subr.mxu0 0.0
    %103 = vmatpush2.msra.mxu0 0.0
    %104 = vmatprep.subr.mxu0 0.0
    %105 = vmatpush2.msra.mxu0 0.0
    %106 = vmatprep.subr.mxu0 0.0
    %107 = vmatpush2.msra.mxu0 0.0
    %108 = vmatprep.subr.mxu0 0.0
    %109 = vmatpush2.msra.mxu0 0.0
    %110 = vmatprep.subr.mxu0 0.0
    %111 = vmatpush2.msra.mxu0 0.0
    %112 = vmatprep.subr.mxu0 0.0
    %113 = vmatpush2.msra.mxu0 0.0
    %114 = vmatprep.subr.mxu0 0.0
    %115 = vmatpush2.msra.mxu0 0.0
    %116 = vmatprep.subr.mxu0 0.0
    %117 = vmatpush2.msra.mxu0 0.0
    %118 = vmatprep.subr.mxu0 0.0
    %119 = vmatpush2.msra.mxu0 0.0
    %120 = vmatprep.subr.mxu0 0.0
    %121 = vmatpush2.msra.mxu0 0.0
    %122 = vmatprep.subr.mxu0 0.0
    %123 = vmatpush2.msra.mxu0 0.0
    %124 = vmatprep.subr.mxu0 0.0
    %125 = vmatpush2.msra.mxu0 0.0
    %126 = vmatprep.subr.mxu0 0.0
    %127 = vmatpush2.msra.mxu0 0.0
    %128 = vmatprep.mubr.f32.mxu0 0.0
    %129 = vmatmul.mubr.f32.gmra.mxu0 %v47
    %v130 = vpop.f32.mrf.mxu0
    %v131 = vadd.f32 0.0, %v130
    %v132 = vpop.f32.mrf.mxu0
    %133 = vdwg.mxu0
    %v134 = vadd.f32 %v46, %v131
    %135 = vst [vmem:[#allocation7] sm:$0xff] %v134
    // Predicated region
    $region26: #{tpu_custom_call.1} parent=1 // pred_check
      %p136 = pneg %p41
    $region27: #{tpu_custom_call.1} parent=1 // pred_check_branch
      %138 = sbr.rel (%p136) target = $region29
    $region28: #{tpu_custom_call.1} parent=1 // pred_region
      %v139 = vld [vmem:[#allocation7] sm:$0xff]
      %v140 = vld [vmem:[%s2] sm:$0x1]
      %v142 = vlaneseq
      %v143 = vshrl.u32 %v142, 7
      %v144 = vsub.s32 0, %v143
      %v145 = vrot.slane %v140, %v144
      %v147 = vadd.f32 %v139, %v145
      %vm148 = vcmp.ge.f32.partialorder %v147, 0.0
      %v149 = vmul.f32 %v147, 0.2
      %v150 = vsel %vm148, %v147, %v149
      %151 = vst [vmem:[#allocation7] sm:$0xff] %v150
    $region29: #{tpu_custom_call.1} parent=1 // pred_fallthru
      _
    // Predicated region
    $region30: #{tpu_custom_call.1} parent=1 // pred_check
      _
    $region31: #{tpu_custom_call.1} parent=1 // pred_check_branch
      %153 = sbr.rel (0) target = $region33
    $region32: #{tpu_custom_call.1} parent=1 // pred_region
      %s155 = ssub.s32 128, 128
      %156 = vsyncadd [#allocation4], %s155
      %s158 = sshll.u32 [#allocation7], 4
      %s159 = int_to_ptr.vmem [resolvable:$true] %s158
      %161 = dma.vmem_to_hbm [thread:$0]  %s159, 128, %s3, [#allocation4]
    $region33: #{tpu_custom_call.1} parent=1 // pred_fallthru
      _
    // Predicated region
    $region34: #{tpu_custom_call.1} parent=1 // pred_check
      _
    $region35: #{tpu_custom_call.1} parent=1 // pred_check_branch
      %163 = sbr.rel (0) target = $region37
    $region36: #{tpu_custom_call.1} parent=1 // pred_region
      %164 = dma.done [#allocation4], 128
    $region37: #{tpu_custom_call.1} parent=1 // pred_fallthru
      _
    %165 = vsyncpa [#allocation3], 1
    %166 = vsyncpa [#allocation6], 1
    %167 = vsyncpa [#allocation4], 1

</llo_original>
